<compile_context>
chip_gen: v7x
topology: tpu7x:2x2x1
jax: 0.10.0
libtpu: 0.0.40
codegen_flags: <defaults>
</compile_context>

<pallas_src>
import functools

import jax
import jax.numpy as jnp
from jax.experimental import pallas as pl
from jax.experimental.pallas import tpu as pltpu


# ---------------------------------------------------------------------------
# Kernels
# ---------------------------------------------------------------------------

def basic_block_kernel(x_ref, b_ref, shift_ref, o_ref, *, nimg, Cin, H, W,
                       Cout, padding):
    """Conv3x3 (one lowered matmul) -> BN shift -> ReLU, nimg images per step.

    x_ref:     (nimg, H, Cin*W)     rows in natural order
    b_ref:     (3*Cin*W, Wc*Cout)   lowered conv weights (bf16), BN scale folded
    shift_ref: (1, Wc*Cout)         folded BN shift (f32)
    o_ref:     (1, nimg*Hc, Wc*Cout)
    """
    del Cout
    Hc = H + 2 * padding - 2
    CW = Cin * W

    x = x_ref[...]                                          # (nimg, H, CW)
    if padding > 0:
        z = jnp.zeros((nimg, padding, CW), x.dtype)
        xpad = jnp.concatenate([z, x, z], axis=1)           # (nimg, H+2p, CW)
    else:
        xpad = x

    # lhs[(n, h), (i, cin, w')] = x[n, cin, h + i - p, w']  (zero outside H)
    lhs = jnp.concatenate([xpad[:, i:i + Hc, :] for i in range(3)], axis=2)
    lhs = lhs.reshape(nimg * Hc, 3 * CW).astype(jnp.bfloat16)

    # Single MXU matmul per grid step, f32 accumulation.
    y = jnp.dot(lhs, b_ref[...], preferred_element_type=jnp.float32)

    # BN scale is pre-folded into b_ref's columns; only shift + ReLU remain.
    y = jnp.maximum(y + shift_ref[...], 0.0)

    # TODO(synk): Dropout2d(0.05) is identity in eval mode; not applied here.
    o_ref[0] = y.astype(o_ref.dtype)


def basic_block_pool_kernel(x_ref, b_ref, scale_ref, shift_ref, o_ref, *,
                            nimg, Cin, H, W, Cout, padding, pack_rows):
    """Conv3x3 -> MaxPool2x2 -> BN -> ReLU, nimg images per grid step.

    x_ref:     (nimg, H, Cin*W)       per image: rows [even h | odd h]
    b_ref:     (4*Cin*W, 2*Wc*Cout)   pooled-lowered conv weights (bf16)
    scale_ref: (1, Wo*Cout)           folded BN scale (f32)
    shift_ref: (1, Wo*Cout)           folded BN shift (f32)
    o_ref:     (1, R, L)              lane-dense output block
    """
    Hc = H + 2 * padding - 2
    Wc = W + 2 * padding - 2
    Ho, Wo = Hc // 2, Wc // 2
    H2 = H // 2
    CW = Cin * W

    x = x_ref[...]                                          # (nimg, H, CW)
    xe = x[:, :H2, :]                                       # x rows 0,2,4,...
    xo = x[:, H2:, :]                                       # x rows 1,3,5,...

    def tap(t):
        # Vertical tap t of the pooled window: source x row (2q - p + t).
        src = xe if (t - padding) % 2 == 0 else xo
        off = (t - padding) // 2
        lo, hi = max(0, -off), max(0, off + Ho - H2)
        core = src[:, max(0, off):min(H2, off + Ho), :]
        parts = ([jnp.zeros((nimg, lo, CW), x.dtype)] if lo else []) \
            + [core] + ([jnp.zeros((nimg, hi, CW), x.dtype)] if hi else [])
        return jnp.concatenate(parts, axis=1) if len(parts) > 1 else core

    # lhs[(n, q), (t, cin, w')] = x[n, cin, 2q - p + t, w']  (zero outside H)
    lhs = jnp.concatenate([tap(t) for t in range(4)], axis=2)  # (nimg, Ho, 4CW)
    lhs = lhs.reshape(nimg * Ho, 4 * CW).astype(jnp.bfloat16)

    # One MXU matmul computes both rows of every 2x2 window side by side:
    # columns = (s in {2q, 2q+1}) x ([even w | odd w]) x cout.
    y = jnp.dot(lhs, b_ref[...], preferred_element_type=jnp.float32)

    half_s = Wc * Cout
    y = jnp.maximum(y[:, :half_s], y[:, half_s:])           # H-pool (lane halves)
    half_w = Wo * Cout
    y = jnp.maximum(y[:, :half_w], y[:, half_w:])           # W-pool (lane halves)

    # BatchNorm (eval, running stats) AFTER the pool, then ReLU, all f32.
    y = jnp.maximum(y * scale_ref[...] + shift_ref[...], 0.0)

    if pack_rows:
        # 128-lane-dense store: packed row r = [pooled row r | row r + R/2].
        hr = (nimg * Ho) // 2
        y = jnp.concatenate([y[:hr, :], y[hr:, :]], axis=1)

    # TODO(synk): Dropout2d(0.05) is identity in eval mode; not applied here.
    o_ref[0] = y.astype(o_ref.dtype)


# ---------------------------------------------------------------------------
# Parameter lowering (one-time, wrapper side)
# ---------------------------------------------------------------------------

def _h_lowered_taps(weight_oihw, W, padding, pool_perm):
    """(Cout, Cin, 3, 3) -> (3, Cin, W, Wc, Cout) with
    out[i, cin, w', wout, cout] = weight[cout, cin, i, w' - wout + padding]
    (zero when the horizontal tap falls outside [0,3); this also encodes the
    conv's zero W-padding).  If pool_perm, the wout axis is permuted to
    [even wout | odd wout] so the W-pool is a max of the two lane halves."""
    Cout, Cin, kh, kw = weight_oihw.shape
    assert kh == 3 and kw == 3, "BasicBlock uses a 3x3 convolution"
    Wc = W + 2 * padding - 2
    wt = jnp.transpose(weight_oihw, (2, 1, 3, 0))           # (i, cin, j, cout)
    dj = jnp.arange(W)[:, None] - jnp.arange(Wc)[None, :] + padding
    valid = (dj >= 0) & (dj <= 2)
    b = wt[:, :, jnp.clip(dj, 0, 2), :]                     # (3, Cin, W, Wc, Cout)
    b = jnp.where(valid[None, None, :, :, None], b, 0.0)
    if pool_perm:
        b = jnp.concatenate([b[:, :, :, 0::2, :], b[:, :, :, 1::2, :]], axis=3)
    return b


def _lowered_conv_weights(weight_oihw, W, padding, scale=None):
    """No-pool path: (3*Cin*W, Wc*Cout); BN scale folded per cout column."""
    b = _h_lowered_taps(weight_oihw, W, padding, pool_perm=False)
    if scale is not None:
        b = b * scale[None, None, None, None, :]
    _, Cin = weight_oihw.shape[:2]
    Cout = weight_oihw.shape[0]
    Wc = W + 2 * padding - 2
    return b.reshape(3 * Cin * W, Wc * Cout).astype(jnp.bfloat16)


def _lowered_conv_weights_pooled(weight_oihw, W, padding):
    """MaxPool path: (4*Cin*W, 2*Wc*Cout).  Rows index (t, cin, w') over the
    four x rows feeding a 2-row pool window; columns (s, [even|odd] wout, cout)
    hold conv rows 2q+s side by side so the H-pool is a lane-half max."""
    bh = _h_lowered_taps(weight_oihw, W, padding, pool_perm=True)
    Cout, Cin = weight_oihw.shape[0], weight_oihw.shape[1]
    Wc = W + 2 * padding - 2
    di = jnp.arange(4)[:, None] - jnp.arange(2)[None, :]    # i = t - s
    vvalid = (di >= 0) & (di <= 2)
    b4 = bh[jnp.clip(di, 0, 2)]                             # (4, 2, Cin, W, Wc, Cout)
    b4 = jnp.where(vvalid[:, :, None, None, None, None], b4, 0.0)
    b4 = jnp.transpose(b4, (0, 2, 3, 1, 4, 5))              # (t, cin, w', s, wout, cout)
    return b4.reshape(4 * Cin * W, 2 * Wc * Cout).astype(jnp.bfloat16)


def _pick_image_block(N, rows_per_image, target_rows=256):
    """Images per grid step: largest divisor of N filling ~target_rows of MXU M,
    but keep >= 2 grid steps when possible so both v7x TensorCores get work."""
    divs = [d for d in range(1, N + 1) if N % d == 0]
    cands = [d for d in divs if d * rows_per_image <= target_rows] or [1]
    best = max(cands)
    if N // best < 2:
        two_step = [d for d in cands if N // d >= 2]
        if two_step:
            best = max(two_step)
    return best


# ---------------------------------------------------------------------------
# Wrapper
# ---------------------------------------------------------------------------

def basic_block_forward(x_nchw, weight_oihw, gamma, beta, running_mean,
                        running_var, *, padding=1, mx_pool=False, eps=1e-5):
    """Pallas implementation of BasicBlock.forward (eval mode). NCHW in/out."""
    N, Cin, H, W = x_nchw.shape
    Cout = weight_oihw.shape[0]
    Hc, Wc = H + 2 * padding - 2, W + 2 * padding - 2
    CW = Cin * W
    if mx_pool:
        assert Hc % 2 == 0 and Wc % 2 == 0, "MaxPool2d(2,2) needs even conv out"
    Ho, Wo = (Hc // 2, Wc // 2) if mx_pool else (Hc, Wc)

    # Fold BatchNorm running stats into per-channel scale/shift (eval mode).
    scale = gamma / jnp.sqrt(running_var + eps)
    shift = beta - running_mean * scale

    # One cheap whole-batch relayout: NCHW -> (N, H, Cin*W).
    x_rl = jnp.transpose(x_nchw, (0, 2, 1, 3)).reshape(N, H, CW)

    rows_per_img = Ho if mx_pool else Hc
    nimg = _pick_image_block(N, rows_per_img, target_rows=256)
    G = N // nimg

    if mx_pool:
        # Even/odd H-split so the kernel's 4 vertical-tap slices are contiguous.
        x_in = jnp.concatenate([x_rl[:, 0::2, :], x_rl[:, 1::2, :]], axis=1)
        b_mat = _lowered_conv_weights_pooled(weight_oihw, W, padding)
        K, NC = 4 * CW, 2 * Wc * Cout
        NL = Wo * Cout
        scale_t = jnp.tile(scale, Wo).reshape(1, NL).astype(jnp.float32)
        shift_t = jnp.tile(shift, Wo).reshape(1, NL).astype(jnp.float32)
        pack_rows = (nimg * Ho) % 2 == 0
        R = (nimg * Ho) // 2 if pack_rows else nimg * Ho
        L = 2 * NL if pack_rows else NL
        kernel = functools.partial(basic_block_pool_kernel, nimg=nimg, Cin=Cin,
                                   H=H, W=W, Cout=Cout, padding=padding,
                                   pack_rows=pack_rows)
        in_specs = [pl.BlockSpec((nimg, H, CW), lambda g: (g, 0, 0)),
                    pl.BlockSpec((K, NC), lambda g: (0, 0)),
                    pl.BlockSpec((1, NL), lambda g: (0, 0)),
                    pl.BlockSpec((1, NL), lambda g: (0, 0))]
        operands = (x_in, b_mat, scale_t, shift_t)
        flops = 2 * N * Ho * K * NC
    else:
        x_in = x_rl
        b_mat = _lowered_conv_weights(weight_oihw, W, padding, scale=scale)
        K, NC = 3 * CW, Wc * Cout
        NL = NC
        shift_t = jnp.tile(shift, Wc).reshape(1, NL).astype(jnp.float32)
        pack_rows = False
        R, L = nimg * Hc, NL
        kernel = functools.partial(basic_block_kernel, nimg=nimg, Cin=Cin,
                                   H=H, W=W, Cout=Cout, padding=padding)
        in_specs = [pl.BlockSpec((nimg, H, CW), lambda g: (g, 0, 0)),
                    pl.BlockSpec((K, NC), lambda g: (0, 0)),
                    pl.BlockSpec((1, NL), lambda g: (0, 0))]
        operands = (x_in, b_mat, shift_t)
        flops = 2 * N * Hc * K * NC

    cost = pl.CostEstimate(
        flops=flops, transcendentals=0,
        bytes_accessed=(x_in.size * x_in.dtype.itemsize + b_mat.size * 2
                        + 2 * NL * 4 + N * Ho * Wo * Cout * 4))

    out = pl.pallas_call(
        kernel,
        out_shape=jax.ShapeDtypeStruct((G, R, L), x_nchw.dtype),
        grid_spec=pltpu.PrefetchScalarGridSpec(
            num_scalar_prefetch=0,
            grid=(G,),
            in_specs=in_specs,
            out_specs=pl.BlockSpec((1, R, L), lambda g: (g, 0, 0)),
        ),
        compiler_params=pltpu.CompilerParams(
            dimension_semantics=("parallel",)),
        cost_estimate=cost,
    )(*operands)

    # Undo the lane packing / restore the PyTorch NCHW contract (tiny XLA ops).
    if mx_pool and pack_rows:
        hr = (nimg * Ho) // 2
        out = out.reshape(G, hr, 2, Wo * Cout)
        out = jnp.transpose(out, (0, 2, 1, 3)).reshape(G, nimg * Ho, Wo * Cout)
    out = out.reshape(N, Ho, Wo, Cout)
    return jnp.transpose(out, (0, 3, 1, 2))


# ---------------------------------------------------------------------------
# Pure-JAX reference and self-test
# ---------------------------------------------------------------------------

def reference_forward(x_nchw, weight_oihw, gamma, beta, running_mean,
                      running_var, *, padding=1, mx_pool=False, eps=1e-5):
    """Pure-JAX reference matching the PyTorch module in eval mode."""
    y = jax.lax.conv_general_dilated(
        x_nchw, weight_oihw, window_strides=(1, 1),
        padding=[(padding, padding), (padding, padding)],
        dimension_numbers=("NCHW", "OIHW", "NCHW"))
    if mx_pool:
        y = jax.lax.reduce_window(y, -jnp.inf, jax.lax.max,
                                  (1, 1, 2, 2), (1, 1, 2, 2), "VALID")
    scale = gamma / jnp.sqrt(running_var + eps)
    shift = beta - running_mean * scale
    y = y * scale[None, :, None, None] + shift[None, :, None, None]
    return jnp.maximum(y, 0.0)


if __name__ == "__main__":
    key = jax.random.PRNGKey(0)
    k_x, k_w, k_g, k_b, k_m, k_v = jax.random.split(key, 6)

    # Small shapes consistent with the module: N=2, Cin=4, Cout=8, H=W=16.
    N, Cin, Cout, H, W = 2, 4, 8, 16, 16
    padding = 1

    x = jax.random.normal(k_x, (N, Cin, H, W), jnp.float32)
    weight = jax.random.normal(k_w, (Cout, Cin, 3, 3), jnp.float32) * 0.1
    gamma = 1.0 + 0.1 * jax.random.normal(k_g, (Cout,), jnp.float32)
    beta = 0.1 * jax.random.normal(k_b, (Cout,), jnp.float32)
    running_mean = 0.05 * jax.random.normal(k_m, (Cout,), jnp.float32)
    running_var = jnp.abs(1.0 + 0.1 * jax.random.normal(k_v, (Cout,), jnp.float32))

    ok = True
    for mx_pool in (False, True):
        fwd = jax.jit(functools.partial(basic_block_forward, padding=padding,
                                        mx_pool=mx_pool))
        out = jax.block_until_ready(fwd(x, weight, gamma, beta, running_mean,
                                        running_var))
        ref = reference_forward(x, weight, gamma, beta, running_mean,
                                running_var, padding=padding, mx_pool=mx_pool)
        # bf16 matmul operands (f32 accumulation) -> loosened tolerance.
        ok = ok and bool(jnp.allclose(out, ref, atol=5e-2, rtol=5e-2))

    print("KERNEL_OK" if ok else "KERNEL_MISMATCH")
</pallas_src>

<mosaic_0001>
module attributes {stable_mosaic.version = 11 : i64} {
  func.func @basic_block_kernel(%arg0: i32, %arg1: memref<1x16x64xf32, #tpu.memory_space<vmem>>, %arg2: memref<192x128xbf16, #tpu.memory_space<vmem>>, %arg3: memref<1x128xf32, #tpu.memory_space<vmem>>, %arg4: memref<1x16x128xf32, #tpu.memory_space<vmem>>) attributes {dimension_semantics = [#tpu.dimension_semantics<parallel>], iteration_bounds = array<i64: 2>, scalar_prefetch = 0 : i64, scratch_operands = 0 : i64, tpu.core_type = #tpu.core_type<tc>, window_params = [{transform_indices = @transform_0, window_bounds = array<i64: 1, 16, 64>}, {pipeline_mode = #tpu.pipeline_mode<synchronous>, transform_indices = @transform_1, window_bounds = array<i64: 192, 128>}, {pipeline_mode = #tpu.pipeline_mode<synchronous>, transform_indices = @transform_2, window_bounds = array<i64: 1, 128>}, {transform_indices = @transform_3, window_bounds = array<i64: 1, 16, 128>}]} {
    %c0 = arith.constant 0 : index
    %c0_0 = arith.constant 0 : index
    %c0_1 = arith.constant 0 : index
    %0 = vector.load %arg1[%c0, %c0_0, %c0_1] : memref<1x16x64xf32, #tpu.memory_space<vmem>>, vector<1x16x64xf32>
    %cst = arith.constant 0.000000e+00 : f32
    %1 = vector.broadcast %cst : f32 to vector<1x1x64xf32>
    %2 = tpu.concatenate %1, %0, %1 in 1 : vector<1x1x64xf32>, vector<1x16x64xf32>, vector<1x1x64xf32> -> vector<1x18x64xf32>
    %3 = vector.extract_strided_slice %2 {offsets = [0, 0, 0], sizes = [1, 16, 64], strides = [1, 1, 1]} : vector<1x18x64xf32> to vector<1x16x64xf32>
    %4 = vector.extract_strided_slice %2 {offsets = [0, 1, 0], sizes = [1, 16, 64], strides = [1, 1, 1]} : vector<1x18x64xf32> to vector<1x16x64xf32>
    %5 = vector.extract_strided_slice %2 {offsets = [0, 2, 0], sizes = [1, 16, 64], strides = [1, 1, 1]} : vector<1x18x64xf32> to vector<1x16x64xf32>
    %6 = tpu.concatenate %3, %4, %5 in 2 : vector<1x16x64xf32>, vector<1x16x64xf32>, vector<1x16x64xf32> -> vector<1x16x192xf32>
    %7 = vector.shape_cast %6 : vector<1x16x192xf32> to vector<16x192xf32>
    %8 = arith.truncf %7 : vector<16x192xf32> to vector<16x192xbf16>
    %c0_2 = arith.constant 0 : index
    %c0_3 = arith.constant 0 : index
    %9 = vector.load %arg2[%c0_2, %c0_3] : memref<192x128xbf16, #tpu.memory_space<vmem>>, vector<192x128xbf16>
    %cst_4 = arith.constant dense<0.000000e+00> : vector<16x128xf32>
    %10 = tpu.matmul %8, %9, %cst_4 {dimension_numbers = #tpu.dot_dimension_numbers<[1], [0], [0], [1], [0, 0, 1, 1], [], []>} : vector<16x192xbf16>, vector<192x128xbf16>, vector<16x128xf32> -> vector<16x128xf32>
    %c0_5 = arith.constant 0 : index
    %c0_6 = arith.constant 0 : index
    %11 = vector.load %arg3[%c0_5, %c0_6] : memref<1x128xf32, #tpu.memory_space<vmem>>, vector<1x128xf32>
    %12 = vector.broadcast %11 : vector<1x128xf32> to vector<16x128xf32>
    %13 = arith.addf %10, %12 : vector<16x128xf32>
    %cst_7 = arith.constant 0.000000e+00 : f32
    %14 = vector.broadcast %cst_7 : f32 to vector<16x128xf32>
    %15 = arith.maximumf %13, %14 : vector<16x128xf32>
    %c0_8 = arith.constant 0 : index
    %c0_9 = arith.constant 0 : index
    %c0_10 = arith.constant 0 : index
    %16 = vector.load %arg4[%c0_8, %c0_9, %c0_10] : memref<1x16x128xf32, #tpu.memory_space<vmem>>, vector<1x16x128xf32>
    %17 = vector.shape_cast %16 : vector<1x16x128xf32> to vector<16x128xf32>
    %18 = vector.shape_cast %15 : vector<16x128xf32> to vector<1x16x128xf32>
    tpu.vector_store %arg4[%c0_8, %c0_9, %c0_10], %18 {strides = array<i32>} : memref<1x16x128xf32, #tpu.memory_space<vmem>>, vector<1x16x128xf32>,
    return
  }
  func.func @transform_0(%arg0: i32) -> (i32, i32, i32) {
    %c0_i32 = arith.constant 0 : i32
    %c0_i32_0 = arith.constant 0 : i32
    %c0_i32_1 = arith.constant 0 : i32
    return %arg0, %c0_i32, %c0_i32_0 : i32, i32, i32
  }
  func.func @transform_1(%arg0: i32) -> (i32, i32) {
    %c0_i32 = arith.constant 0 : i32
    %c0_i32_0 = arith.constant 0 : i32
    %c0_i32_1 = arith.constant 0 : i32
    return %c0_i32, %c0_i32_0 : i32, i32
  }
  func.func @transform_2(%arg0: i32) -> (i32, i32) {
    %c0_i32 = arith.constant 0 : i32
    %c0_i32_0 = arith.constant 0 : i32
    %c0_i32_1 = arith.constant 0 : i32
    return %c0_i32, %c0_i32_0 : i32, i32
  }
  func.func @transform_3(%arg0: i32) -> (i32, i32, i32) {
    %c0_i32 = arith.constant 0 : i32
    %c0_i32_0 = arith.constant 0 : i32
    %c0_i32_1 = arith.constant 0 : i32
    return %arg0, %c0_i32, %c0_i32_0 : i32, i32, i32
  }
}

</mosaic_0001>

<llo_original>
// kernel: tile.9
$region0: #{tile.9}
  %s0 = inlined_call_operand.vmem [shape: f32[16,8], index: 0, kind: input, shape index: {}]
  %s1 = inlined_call_operand.vmem [shape: f32[1,128], index: 1, kind: output, shape index: {}]
  $region1: #{tile.9} parent=0
    #allocation0 [shape = 'u8[4096]{0}', space=vmem, size = 0x1000, scoped, tag = 'scoped mem for output reshape']
    %v2 = vld [vmem:[%s0] sm:$0x1]
    %vm3 = vcmask 64512
    %4 = vst.msk [vmem:[#allocation0] sm:$0x1] %vm3, %v2
    %s5 = scalar_lea.vmem %s0, 15
    %v6 = vld [vmem:[%s5] sm:$0x1]
    %7 = vrot.lane.b32.xlu0 %v6, 120
    %v8 = vpop.permute.xlu0 %7
    %vm9 = vcmask 1048512
    %10 = vst.msk [vmem:[#allocation0] sm:$0x1] %vm9, %v8
    %s11 = scalar_lea.vmem %s0, 14
    %v12 = vld [vmem:[%s11] sm:$0x1]
    %13 = vrot.lane.b32.xlu0 %v12, 112
    %v14 = vpop.permute.xlu0 %13
    %vm15 = vcmask 982912
    %16 = vst.msk [vmem:[#allocation0] sm:$0x1] %vm15, %v14
    %s17 = scalar_lea.vmem %s0, 13
    %v18 = vld [vmem:[%s17] sm:$0x1]
    %19 = vrot.lane.b32.xlu0 %v18, 104
    %v20 = vpop.permute.xlu0 %19
    %vm21 = vcmask 917312
    %22 = vst.msk [vmem:[#allocation0] sm:$0x1] %vm21, %v20
    %s23 = scalar_lea.vmem %s0, 12
    %v24 = vld [vmem:[%s23] sm:$0x1]
    %25 = vrot.lane.b32.xlu0 %v24, 96
    %v26 = vpop.permute.xlu0 %25
    %vm27 = vcmask 851712
    %28 = vst.msk [vmem:[#allocation0] sm:$0x1] %vm27, %v26
    %s29 = scalar_lea.vmem %s0, 11
    %v30 = vld [vmem:[%s29] sm:$0x1]
    %31 = vrot.lane.b32.xlu0 %v30, 88
    %v32 = vpop.permute.xlu0 %31
    %vm33 = vcmask 786112
    %34 = vst.msk [vmem:[#allocation0] sm:$0x1] %vm33, %v32
    %s35 = scalar_lea.vmem %s0, 10
    %v36 = vld [vmem:[%s35] sm:$0x1]
    %37 = vrot.lane.b32.xlu0 %v36, 80
    %v38 = vpop.permute.xlu0 %37
    %vm39 = vcmask 720512
    %40 = vst.msk [vmem:[#allocation0] sm:$0x1] %vm39, %v38
    %s41 = scalar_lea.vmem %s0, 9
    %v42 = vld [vmem:[%s41] sm:$0x1]
    %43 = vrot.lane.b32.xlu0 %v42, 72
    %v44 = vpop.permute.xlu0 %43
    %vm45 = vcmask 654912
    %46 = vst.msk [vmem:[#allocation0] sm:$0x1] %vm45, %v44
    %s47 = scalar_lea.vmem %s0, 8
    %v48 = vld [vmem:[%s47] sm:$0x1]
    %49 = vrot.lane.b32.xlu0 %v48, 64
    %v50 = vpop.permute.xlu0 %49
    %vm51 = vcmask 589312
    %52 = vst.msk [vmem:[#allocation0] sm:$0x1] %vm51, %v50
    %s53 = scalar_lea.vmem %s0, 7
    %v54 = vld [vmem:[%s53] sm:$0x1]
    %55 = vrot.lane.b32.xlu0 %v54, 56
    %v56 = vpop.permute.xlu0 %55
    %vm57 = vcmask 523712
    %58 = vst.msk [vmem:[#allocation0] sm:$0x1] %vm57, %v56
    %s59 = scalar_lea.vmem %s0, 6
    %v60 = vld [vmem:[%s59] sm:$0x1]
    %61 = vrot.lane.b32.xlu0 %v60, 48
    %v62 = vpop.permute.xlu0 %61
    %vm63 = vcmask 458112
    %64 = vst.msk [vmem:[#allocation0] sm:$0x1] %vm63, %v62
    %s65 = scalar_lea.vmem %s0, 5
    %v66 = vld [vmem:[%s65] sm:$0x1]
    %67 = vrot.lane.b32.xlu0 %v66, 40
    %v68 = vpop.permute.xlu0 %67
    %vm69 = vcmask 392512
    %70 = vst.msk [vmem:[#allocation0] sm:$0x1] %vm69, %v68
    %s71 = scalar_lea.vmem %s0, 4
    %v72 = vld [vmem:[%s71] sm:$0x1]
    %73 = vrot.lane.b32.xlu0 %v72, 32
    %v74 = vpop.permute.xlu0 %73
    %vm75 = vcmask 326912
    %76 = vst.msk [vmem:[#allocation0] sm:$0x1] %vm75, %v74
    %s77 = scalar_lea.vmem %s0, 3
    %v78 = vld [vmem:[%s77] sm:$0x1]
    %79 = vrot.lane.b32.xlu0 %v78, 24
    %v80 = vpop.permute.xlu0 %79
    %vm81 = vcmask 261312
    %82 = vst.msk [vmem:[#allocation0] sm:$0x1] %vm81, %v80
    %s83 = scalar_lea.vmem %s0, 2
    %v84 = vld [vmem:[%s83] sm:$0x1]
    %85 = vrot.lane.b32.xlu0 %v84, 16
    %v86 = vpop.permute.xlu0 %85
    %vm87 = vcmask 195712
    %88 = vst.msk [vmem:[#allocation0] sm:$0x1] %vm87, %v86
    %s89 = scalar_lea.vmem %s0, 1
    %v90 = vld [vmem:[%s89] sm:$0x1]
    %91 = vrot.lane.b32.xlu0 %v90, 8
    %v92 = vpop.permute.xlu0 %91
    %vm93 = vcmask 130112
    %94 = vst.msk [vmem:[#allocation0] sm:$0x1] %vm93, %v92
    %s96 = sshllo.u32 0, 1
    %v98 = vld [vmem:[#allocation0] sm:%s96]
    %s99 = sshllo.u32 0, 1
    %100 = vst [vmem:[%s1] sm:%s99] %v98

// kernel: basic_block_forward.1
$region0: #{basic_block_forward.1}
  #allocation0 [shape = 'u32[]', space=smem, size = 0x4, offset = 0x4, fixed_abs, tag = 'smem constant byte address 0x4 - core index']
  #allocation1 [shape = 'u32[144,128]{1,0:T(1,128)}', space=vmem, size = 0x12000, scoped, tag = 'internal scratch']
  %s0 = inlined_call_operand.vmem [shape: f32[2,16,64], index: 0, kind: input, shape index: {}]
  %s1 = inlined_call_operand.vmem [shape: bf16[192,128], index: 1, kind: input, shape index: {}]
  %s2 = inlined_call_operand.vmem [shape: f32[1,128], index: 2, kind: input, shape index: {}]
  %s3 = inlined_call_operand.vmem [shape: f32[2,16,128], index: 3, kind: output, shape index: {}]
  %s4 = sld [smem:[#allocation0]]
  $region45: #{basic_block_forward.1} parent=0
    _
  %s6 = ssub.s32 1, %s4
  %s7 = scalar_select 0, %s6, %s4
  loop: start=0, step=1, limit=4
  $region2: #{basic_block_forward.1} parent=0 // loop_pre_header
    _
  $region3: #{basic_block_forward.1} parent=0 // loop_header
    %s9 = sphi 0, %s13
    %p10 = scmp.ge.s32.totalorder %s9, 4
    %s19 = sphi 0, %s21
    %s22 = sphi 0, %s19
    %s23 = sphi 0, %s22
    %s39 = sphi 0, %s23
    %s43 = sphi 0, %s43
    %s45 = sphi 0, %s43
    %s46 = sphi 0, %s45
    %s60 = sphi 0, %s46
    %s64 = sphi 0, %s64
    %s66 = sphi 0, %s64
    %s67 = sphi 0, %s66
    %s81 = sphi 0, %s67
    %s87 = sphi 0, %s89
    %s90 = sphi 0, %s87
    %s91 = sphi 0, %s90
    %s107 = sphi 0, %s91
  $region4: #{basic_block_forward.1} parent=0 // loop_header_branch
    %12 = sbr.rel (%p10) target = $region8
  $region5: #{basic_block_forward.1} parent=0 // loop_body
    %s14 = ssub.s32 %s9, 1
    %s15 = ssub.s32 %s9, 2
    %s16 = sadd.s32 %s9, 1
    %s17 = ssub.s32 %s9, %s16
    %p18 = scmp.eq.s32.totalorder %s17, 0
    %s20 = sadd.s32 %s19, 1
    %s21 = scalar_select %p18, %s19, %s20
    %p24 = pneg %p18
    %p25 = scmp.eq.s32.totalorder %s9, 1
    %p26 = por %p24, %p25
    %p27 = scmp.ne.s32.totalorder %s19, %s22
    %p28 = scmp.eq.s32.totalorder %s9, 0
    %p29 = por %p27, %p28
    %p30 = scmp.ne.s32.totalorder %s19, %s22
    %p31 = scmp.eq.s32.totalorder %s14, 1
    %p32 = por %p30, %p31
    %p33 = scmp.ne.s32.totalorder %s22, %s23
    %p34 = scmp.eq.s32.totalorder %s14, 0
    %p35 = por %p33, %p34
    %p36 = scmp.ne.s32.totalorder %s22, %s23
    %p37 = scmp.eq.s32.totalorder %s15, 1
    %p38 = por %p36, %p37
    %p40 = scmp.ne.s32.totalorder %s23, %s39
    %p41 = scmp.eq.s32.totalorder %s15, 0
    %p42 = por %p40, %p41
    %s44 = sadd.s32 %s43, 1
    %p47 = scmp.eq.s32.totalorder %s9, 1
    %p48 = scmp.ne.s32.totalorder %s43, %s45
    %p49 = scmp.eq.s32.totalorder %s9, 0
    %p50 = por %p48, %p49
    %p51 = scmp.ne.s32.totalorder %s43, %s45
    %p52 = scmp.eq.s32.totalorder %s14, 1
    %p53 = por %p51, %p52
    %p54 = scmp.ne.s32.totalorder %s45, %s46
    %p55 = scmp.eq.s32.totalorder %s14, 0
    %p56 = por %p54, %p55
    %p57 = scmp.ne.s32.totalorder %s45, %s46
    %p58 = scmp.eq.s32.totalorder %s15, 1
    %p59 = por %p57, %p58
    %p61 = scmp.ne.s32.totalorder %s46, %s60
    %p62 = scmp.eq.s32.totalorder %s15, 0
    %p63 = por %p61, %p62
    %s65 = sadd.s32 %s64, 1
    %p68 = scmp.eq.s32.totalorder %s9, 1
    %p69 = scmp.ne.s32.totalorder %s64, %s66
    %p70 = scmp.eq.s32.totalorder %s9, 0
    %p71 = por %p69, %p70
    %p72 = scmp.ne.s32.totalorder %s64, %s66
    %p73 = scmp.eq.s32.totalorder %s14, 1
    %p74 = por %p72, %p73
    %p75 = scmp.ne.s32.totalorder %s66, %s67
    %p76 = scmp.eq.s32.totalorder %s14, 0
    %p77 = por %p75, %p76
    %p78 = scmp.ne.s32.totalorder %s66, %s67
    %p79 = scmp.eq.s32.totalorder %s15, 1
    %p80 = por %p78, %p79
    %p82 = scmp.ne.s32.totalorder %s67, %s81
    %p83 = scmp.eq.s32.totalorder %s15, 0
    %p84 = por %p82, %p83
    %s85 = ssub.s32 %s9, %s16
    %p86 = scmp.eq.s32.totalorder %s85, 0
    %s88 = sadd.s32 %s87, 1
    %s89 = scalar_select %p86, %s87, %s88
    %p92 = pneg %p86
    %p93 = scmp.eq.s32.totalorder %s9, 1
    %p94 = por %p92, %p93
    %p95 = scmp.ne.s32.totalorder %s87, %s90
    %p96 = scmp.eq.s32.totalorder %s9, 0
    %p97 = por %p95, %p96
    %p98 = scmp.ne.s32.totalorder %s87, %s90
    %p99 = scmp.eq.s32.totalorder %s14, 1
    %p100 = por %p98, %p99
    %p101 = scmp.ne.s32.totalorder %s90, %s91
    %p102 = scmp.eq.s32.totalorder %s14, 0
    %p103 = por %p101, %p102
    %p104 = scmp.ne.s32.totalorder %s90, %s91
    %p105 = scmp.eq.s32.totalorder %s15, 1
    %p106 = por %p104, %p105
    %p108 = scmp.ne.s32.totalorder %s91, %s107
    %p109 = scmp.eq.s32.totalorder %s15, 0
    %p110 = por %p108, %p109
    %p111 = scmp.le.s32.totalorder 1, %s9
    %p112 = scmp.lt.s32.totalorder %s9, 3
    %p113 = pnand %p111, %p112
    %p114 = pneg %p113
    // Predicated region
    $region9: #{basic_block_forward.1} parent=5 // pred_check
      _
    $region10: #{basic_block_forward.1} parent=5 // pred_check_branch
      %116 = sbr.rel (%p113) target = $region12
    $region11: #{basic_block_forward.1} parent=5 // pred_region
      %s117 = ssub.s32 %s9, 1
      // Predicated region
      $region13: #{basic_block_forward.1} parent=11 // pred_check
        %p118 = pneg %p56
      $region14: #{basic_block_forward.1} parent=11 // pred_check_branch
        %120 = sbr.rel (%p118) target = $region16
      $region15: #{basic_block_forward.1} parent=11 // pred_region
        _
      $region16: #{basic_block_forward.1} parent=11 // pred_fallthru
        _
      // Predicated region
      $region17: #{basic_block_forward.1} parent=11 // pred_check
        %p121 = pneg %p77
      $region18: #{basic_block_forward.1} parent=11 // pred_check_branch
        %123 = sbr.rel (%p121) target = $region20
      $region19: #{basic_block_forward.1} parent=11 // pred_region
        _
      $region20: #{basic_block_forward.1} parent=11 // pred_fallthru
        _
    $region12: #{basic_block_forward.1} parent=5 // pred_fallthru
      _
    %p124 = scmp.lt.s32.totalorder %s9, 2
    // Predicated region
    $region21: #{basic_block_forward.1} parent=5 // pred_check
      %p125 = pneg %p124
    $region22: #{basic_block_forward.1} parent=5 // pred_check_branch
      %127 = sbr.rel (%p125) target = $region24
    $region23: #{basic_block_forward.1} parent=5 // pred_region
      // Predicated region
      $region25: #{basic_block_forward.1} parent=23 // pred_check
        %p128 = pneg %p29
      $region26: #{basic_block_forward.1} parent=23 // pred_check_branch
        %130 = sbr.rel (%p128) target = $region28
      $region27: #{basic_block_forward.1} parent=23 // pred_region
        %p131 = scmp.lt.s32.totalorder %s9, 1
        %s132 = scalar_select %p131, %s9, 1
        %s133 = smul.addr %s132, 2
        %s134 = smul.addr %s133, 8
        %s135 = scalar_lea.vmem %s0, %s134
      $region28: #{basic_block_forward.1} parent=23 // pred_fallthru
        _
    $region24: #{basic_block_forward.1} parent=5 // pred_fallthru
      _
    %p136 = scmp.le.s32.totalorder 1, %s9
    %p137 = scmp.lt.s32.totalorder %s9, 3
    %p138 = pnand %p136, %p137
    %p139 = pneg %p138
    // Predicated region
    $region29: #{basic_block_forward.1} parent=5 // pred_check
      _
    $region30: #{basic_block_forward.1} parent=5 // pred_check_branch
      %141 = sbr.rel (%p138) target = $region32
    $region31: #{basic_block_forward.1} parent=5 // pred_region
      %s142 = ssub.s32 %s9, 1
      %p143 = scmp.lt.s32.totalorder %s14, 1
      %s144 = scalar_select %p143, %s14, 1
      %s145 = smul.addr %s144, 2
      %s146 = smul.addr %s145, 8
      %s147 = scalar_lea.vmem %s0, %s146
      %p148 = pneg %p35
      %p149 = pneg %p32
      %p150 = pneg %p56
      %p151 = pneg %p53
      %p152 = pneg %p77
      %p153 = pneg %p74
      %p154 = pneg %p103
      %p155 = pneg %p100
      %p156 = scmp.lt.s32.totalorder %s14, 1
      %s157 = scalar_select %p156, %s14, 1
      %s158 = smul.addr %s157, 2
      %s159 = smul.addr %s158, 8
      %s160 = scalar_lea.vmem %s3, %s159
      %p161 = scmp.lt.s32.totalorder %s14, 1
      %s162 = scalar_select %p161, %s14, 1
      %s163 = smul.addr %s162, 2
      %s164 = smul.addr %s163, 8
      %s165 = scalar_lea.vmem %s0, %s164
      %p166 = scmp.lt.s32.totalorder %s14, 1
      %s167 = scalar_select %p166, %s14, 1
      %s168 = smul.addr %s167, 2
      %s169 = smul.addr %s168, 8
      %s170 = scalar_lea.vmem %s3, %s169
      %v172 = vld [vmem:[%s165] sm:$0xff]
      %v173 = vld [vmem:[%s165 + $0x8] sm:$0xff]
      %vm176 = vcmask 1040384
      %v177 = vrot.slane %v172, 7
      %v178 = vrot.slane %v173, 7
      %v179 = vsel %vm176, %v177, %v178
      %v183 = vsel %vm176, 0.0, %v177
      %v184 = vsel %vm176, %v178, 0.0
      %vm187 = vcmask 1046528
      %v188 = vrot.slane %v183, 1
      %v189 = vrot.slane %v179, 1
      %v190 = vsel %vm187, %v188, %v189
      %v191 = vrot.slane %v184, 1
      %v192 = vsel %vm187, %v189, %v191
      %193 = vrot.lane.b32.xlu0 %v190, 64
      %v194 = vpop.permute.xlu0 %193
      %195 = vrot.lane.b32.xlu0 %v192, 64
      %v196 = vpop.permute.xlu0 %195
      %vm199 = vcmask 1045504
      %v200 = vrot.slane %v183, 2
      %v201 = vrot.slane %v179, 2
      %v202 = vsel %vm199, %v200, %v201
      %v203 = vrot.slane %v184, 2
      %v204 = vsel %vm199, %v201, %v203
      %vm207 = vcmask 523264
      %v208 = vsel %vm207, %v183, %v194
      %v209 = vsel %vm207, %v179, %v196
      %v210 = vpack.c.bf16 %v209, %v208
      %v211 = vpack.c.bf16 %v204, %v202
      %v212 = vld [vmem:[%s1] sm:$0xf]
      %v213 = vld [vmem:[%s1 + $0x4] sm:$0xf]
      %v214 = vld [vmem:[%s1 + $0x8] sm:$0xf]
      %v215 = vld [vmem:[%s1 + $0xc] sm:$0xf]
      %v216 = vld [vmem:[%s1 + $0x10] sm:$0xf]
      %v217 = vld [vmem:[%s1 + $0x14] sm:$0xf]
      %v218 = vld [vmem:[%s1 + $0x18] sm:$0xf]
      %v219 = vld [vmem:[%s1 + $0x1c] sm:$0xf]
      %v220 = vld [vmem:[%s1 + $0x20] sm:$0xf]
      %v221 = vld [vmem:[%s1 + $0x24] sm:$0xf]
      %v222 = vld [vmem:[%s1 + $0x28] sm:$0xf]
      %v223 = vld [vmem:[%s1 + $0x2c] sm:$0xf]
      %v224 = vld [vmem:[%s1 + $0x30] sm:$0xf]
      %v225 = vld [vmem:[%s1 + $0x34] sm:$0xf]
      %v226 = vld [vmem:[%s1 + $0x38] sm:$0xf]
      %v227 = vld [vmem:[%s1 + $0x3c] sm:$0xf]
      %v228 = vld [vmem:[%s1 + $0x40] sm:$0xf]
      %v229 = vld [vmem:[%s1 + $0x44] sm:$0xf]
      %v230 = vld [vmem:[%s1 + $0x48] sm:$0xf]
      %v231 = vld [vmem:[%s1 + $0x4c] sm:$0xf]
      %v232 = vld [vmem:[%s1 + $0x50] sm:$0xf]
      %v233 = vld [vmem:[%s1 + $0x54] sm:$0xf]
      %v234 = vld [vmem:[%s1 + $0x58] sm:$0xf]
      %v235 = vld [vmem:[%s1 + $0x5c] sm:$0xf]
      %v236 = vld [vmem:[%s2] sm:$0x1]
      %v238 = vlaneseq
      %v239 = vshrl.u32 %v238, 7
      %v240 = vsub.s32 0, %v239
      %v241 = vrot.slane %v236, %v240
      %v267 = vunpack.c.l.b16 %v212
      %v268 = vunpack.c.l.b16 %v213
      %v269 = vunpack.c.l.b16 %v214
      %v270 = vunpack.c.l.b16 %v215
      %v271 = vunpack.c.l.b16 %v216
      %v272 = vunpack.c.l.b16 %v217
      %v273 = vunpack.c.l.b16 %v218
      %v274 = vunpack.c.l.b16 %v219
      %v275 = vunpack.c.l.b16 %v220
      %v276 = vunpack.c.l.b16 %v221
      %v277 = vunpack.c.l.b16 %v222
      %v278 = vunpack.c.l.b16 %v223
      %v279 = vunpack.c.l.b16 %v224
      %v280 = vunpack.c.l.b16 %v225
      %v281 = vunpack.c.l.b16 %v226
      %v282 = vunpack.c.l.b16 %v227
      %v283 = vunpack.c.l.b16 %v228
      %v284 = vunpack.c.l.b16 %v229
      %v285 = vunpack.c.l.b16 %v230
      %v286 = vunpack.c.l.b16 %v231
      %v287 = vunpack.c.l.b16 %v232
      %v288 = vunpack.c.l.b16 %v233
      %v289 = vunpack.c.l.b16 %v234
      %v290 = vunpack.c.l.b16 %v235
      %v291 = vpack.c.b16 %v268, %v267
      %v292 = vpack.c.b16 %v270, %v269
      %v293 = vpack.c.b16 %v272, %v271
      %v294 = vpack.c.b16 %v274, %v273
      %v295 = vpack.c.b16 %v276, %v275
      %v296 = vpack.c.b16 %v278, %v277
      %v297 = vpack.c.b16 %v280, %v279
      %v298 = vpack.c.b16 %v282, %v281
      %v299 = vpack.c.b16 %v284, %v283
      %v300 = vpack.c.b16 %v286, %v285
      %v301 = vpack.c.b16 %v288, %v287
      %v302 = vpack.c.b16 %v290, %v289
      %v316 = vsel %vm207, %v211, 0
      %318 = vmatprep.subr.bf16.mxu0 0
      %319 = vmatpush1.bf16.msra.mxu0 %v291
      %320 = vmatprep.subr.bf16.mxu0 0
      %321 = vmatpush1.bf16.msra.mxu0 %v292
      %322 = vmatprep.subr.bf16.mxu0 0
      %323 = vmatpush1.bf16.msra.mxu0 %v293
      %324 = vmatprep.subr.bf16.mxu0 0
      %325 = vmatpush1.bf16.msra.mxu0 %v294
      %326 = vmatprep.subr.bf16.mxu0 0
      %327 = vmatpush1.bf16.msra.mxu0 %v295
      %328 = vmatprep.subr.bf16.mxu0 0
      %329 = vmatpush1.bf16.msra.mxu0 %v296
      %330 = vmatprep.subr.bf16.mxu0 0
      %331 = vmatpush1.bf16.msra.mxu0 %v297
      %332 = vmatprep.subr.bf16.mxu0 0
      %333 = vmatpush1.bf16.msra.mxu0 %v298
      %334 = vmatprep.subr.bf16.mxu0 0
      %335 = vmatpush1.bf16.msra.mxu0 %v299
      %336 = vmatprep.subr.bf16.mxu0 0
      %337 = vmatpush1.bf16.msra.mxu0 %v300
      %338 = vmatprep.subr.bf16.mxu0 0
      %339 = vmatpush1.bf16.msra.mxu0 %v301
      %340 = vmatprep.subr.bf16.mxu0 0
      %341 = vmatpush1.bf16.msra.mxu0 %v302
      %342 = vmatprep.subr.bf16.mxu0 0
      %343 = vmatpush1.bf16.msra.mxu0 0
      %344 = vmatprep.subr.bf16.mxu0 0
      %345 = vmatpush1.bf16.msra.mxu0 0
      %346 = vmatprep.subr.bf16.mxu0 0
      %347 = vmatpush1.bf16.msra.mxu0 0
      %348 = vmatprep.subr.bf16.mxu0 0
      %349 = vmatpush1.bf16.msra.mxu0 0
      %350 = vmatprep.mubr.bf16.mxu0 %v316
      %351 = vmatmul.mubr.bf16.gmra.mrb[0].mxu0 %v210
      %v352 = vpop.f32.mrb[0].mxu0
      %v353 = vadd.f32 %v241, %v352
      %v354 = vpop.f32.mrb[0].mxu0
      %v355 = vpop.f32.mrb[0].mxu0
      %v356 = vadd.f32 %v241, %v355
      %v357 = vpop.f32.mrb[0].mxu0
      %358 = vdwg.mxu0
      %v359 = vmax.f32 %v353, 0.0
      %v360 = vmax.f32 %v356, 0.0
      %361 = vst [vmem:[%s170] sm:$0xff] %v359
      %362 = vst [vmem:[%s170 + $0x8] sm:$0xff] %v360
      %p363 = scmp.lt.s32.totalorder %s14, 1
      %s364 = scalar_select %p363, %s14, 1
      %s365 = smul.addr %s364, 2
      %s366 = smul.addr %s365, 8
      %s367 = scalar_lea.vmem %s3, %s366
      // Predicated region
      $region33: #{basic_block_forward.1} parent=31 // pred_check
        %p368 = pneg %p100
      $region34: #{basic_block_forward.1} parent=31 // pred_check_branch
        %370 = sbr.rel (%p368) target = $region36
      $region35: #{basic_block_forward.1} parent=31 // pred_region
        _
      $region36: #{basic_block_forward.1} parent=31 // pred_fallthru
        _
    $region32: #{basic_block_forward.1} parent=5 // pred_fallthru
      _
    %p371 = scmp.le.s32.totalorder 2, %s9
    // Predicated region
    $region37: #{basic_block_forward.1} parent=5 // pred_check
      %p372 = pneg %p371
    $region38: #{basic_block_forward.1} parent=5 // pred_check_branch
      %374 = sbr.rel (%p372) target = $region40
    $region39: #{basic_block_forward.1} parent=5 // pred_region
      %s375 = ssub.s32 %s9, 2
      // Predicated region
      $region41: #{basic_block_forward.1} parent=39 // pred_check
        %p376 = pneg %p106
      $region42: #{basic_block_forward.1} parent=39 // pred_check_branch
        %378 = sbr.rel (%p376) target = $region44
      $region43: #{basic_block_forward.1} parent=39 // pred_region
        %p379 = scmp.lt.s32.totalorder %s15, 1
        %s380 = scalar_select %p379, %s15, 1
        %s381 = smul.addr %s380, 2
        %s382 = smul.addr %s381, 8
        %s383 = scalar_lea.vmem %s3, %s382
      $region44: #{basic_block_forward.1} parent=39 // pred_fallthru
        _
    $region40: #{basic_block_forward.1} parent=5 // pred_fallthru
      _
  $region6: #{basic_block_forward.1} parent=0 // loop_footer
    %s13 = sadd.s32 1, %s9
  $region7: #{basic_block_forward.1} parent=0 // loop_footer_branch
    %8 = sbr.rel target = $region3
  $region8: #{basic_block_forward.1} parent=0 // loop_exit
    _

</llo_original>
